<compile_context>
chip_gen: v5e
topology: v5e:2x2
jax: 0.10.0
libtpu: 0.0.40
codegen_flags: <defaults>
</compile_context>

<pallas_src>
import jax
import jax.numpy as jnp
from jax.experimental import pallas as pl
from jax.experimental.pallas import tpu as pltpu

LANE = 128
SUBLANE = 8


def _round_up(n, m):
    return ((n + m - 1) // m) * m


def qnet_kernel(x_ref, w1_ref, b1_ref, w2_ref, b2_ref, w3_ref, b3_ref, o_ref):
    cdt = w1_ref.dtype
    act_dim = o_ref.shape[-1]
    # Layer 1: Linear(state_dim -> 128) + ReLU (f32 accumulation, in-kernel cast of x).
    h1 = jnp.dot(x_ref[...].astype(cdt), w1_ref[...],
                 preferred_element_type=jnp.float32)
    h1 = jnp.maximum(h1 + b1_ref[...], 0.0)
    # Layer 2: Linear(128 -> 128 [zero-padded from 64]) + ReLU.
    h2 = jnp.dot(h1.astype(cdt), w2_ref[...], preferred_element_type=jnp.float32)
    h2 = jnp.maximum(h2 + b2_ref[...], 0.0)
    # Layer 3: keep the matmul 128-lane wide (zero-padded N); narrow only the store.
    out = jnp.dot(h2.astype(cdt), w3_ref[...], preferred_element_type=jnp.float32)
    o_ref[...] = (out[:, :act_dim] + b3_ref[...]).astype(o_ref.dtype)


def prepare_params(params, compute_dtype=jnp.float32):
    """Pad / cast weights once, outside the per-step forward pass.

    params: (w1 (S,128), b1 (128,), w2 (128,64), b2 (64,), w3 (64,A), b3 (A,)) float32.
    Zero padding of the hidden-2 / action dims to 128 keeps the math exact.
    """
    w1, b1, w2, b2, w3, b3 = params
    h2_dim = w2.shape[1]
    action_dim = w3.shape[1]
    h2_pad = _round_up(h2_dim, LANE)        # 64 -> 128
    act_pad = _round_up(action_dim, LANE)   # 4  -> 128 (matmul width only)

    w1p = w1.astype(compute_dtype)
    w2p = jnp.pad(w2, ((0, 0), (0, h2_pad - h2_dim))).astype(compute_dtype)
    w3p = jnp.pad(w3, ((0, h2_pad - h2_dim), (0, act_pad - action_dim))).astype(compute_dtype)
    b1p = b1.reshape(1, -1).astype(jnp.float32)
    b2p = jnp.pad(b2.reshape(1, -1), ((0, 0), (0, h2_pad - h2_dim))).astype(jnp.float32)
    b3p = b3.reshape(1, -1).astype(jnp.float32)          # stays narrow (1, action_dim)
    return (w1p, b1p, w2p, b2p, w3p, b3p)


def qnetwork_forward(x, prepared, *, tile_batch=1024):
    """Fused MLP forward pass.

    x: (batch, state_dim) float32 (passed through untouched; cast happens in-kernel)
    prepared: output of prepare_params()
    returns (batch, action_dim) float32
    """
    w1p, b1p, w2p, b2p, w3p, b3p = prepared
    batch, state_dim = x.shape
    h1_dim = w1p.shape[1]
    h2_pad = w2p.shape[1]
    act_pad = w3p.shape[1]
    action_dim = b3p.shape[1]

    # Batch tile: multiple of the dtype's sublane packing (8 rows f32 / 16 rows bf16),
    # large enough to amortize ~0.35 us/step grid overhead, split so that >=2 grid
    # programs exist when the batch permits (feeds both v7x TensorCores).
    sub = SUBLANE if w1p.dtype == jnp.float32 else 2 * SUBLANE
    tb = min(tile_batch, _round_up(batch, sub))
    tb = _round_up(tb, sub)
    if pl.cdiv(batch, tb) < 2 and batch >= 2 * sub:
        tb = _round_up(pl.cdiv(batch, 2), sub)
    grid = (pl.cdiv(batch, tb),)

    flops = 2 * batch * (state_dim * h1_dim + h1_dim * h2_pad + h2_pad * act_pad)
    bytes_accessed = (
        x.size * x.dtype.itemsize
        + sum(a.size * a.dtype.itemsize for a in prepared)
        + batch * action_dim * 4
    )

    return pl.pallas_call(
        qnet_kernel,
        out_shape=jax.ShapeDtypeStruct((batch, action_dim), jnp.float32),
        grid_spec=pltpu.PrefetchScalarGridSpec(
            num_scalar_prefetch=0,
            grid=grid,
            in_specs=[
                pl.BlockSpec((tb, state_dim), lambda i: (i, 0)),   # x: tiled over batch
                pl.BlockSpec(w1p.shape, lambda i: (0, 0)),         # weights/biases resident
                pl.BlockSpec(b1p.shape, lambda i: (0, 0)),
                pl.BlockSpec(w2p.shape, lambda i: (0, 0)),
                pl.BlockSpec(b2p.shape, lambda i: (0, 0)),
                pl.BlockSpec(w3p.shape, lambda i: (0, 0)),
                pl.BlockSpec(b3p.shape, lambda i: (0, 0)),
            ],
            out_specs=pl.BlockSpec((tb, action_dim), lambda i: (i, 0)),
        ),
        compiler_params=pltpu.CompilerParams(
            dimension_semantics=("parallel",),       # shard batch tiles across TCs (v7x)
            vmem_limit_bytes=32 * 1024 * 1024,       # conservative for v7x's 64 MiB VMEM
        ),
        cost_estimate=pl.CostEstimate(
            flops=flops, transcendentals=0, bytes_accessed=bytes_accessed
        ),
    )(x, w1p, b1p, w2p, b2p, w3p, b3p)


def init_params(state_dim, action_dim, key):
    """Deterministic parameter init (PyTorch nn.Linear-style uniform bounds).

    Weights are stored as (in_features, out_features) so the kernel computes x @ W + b,
    equivalent to PyTorch's x @ W.T with W of shape (out, in).
    """
    k1, k2, k3, k4, k5, k6 = jax.random.split(key, 6)

    def lin(kw, kb, fan_in, fan_out):
        bound = 1.0 / jnp.sqrt(fan_in)
        w = jax.random.uniform(kw, (fan_in, fan_out), jnp.float32, -bound, bound)
        b = jax.random.uniform(kb, (fan_out,), jnp.float32, -bound, bound)
        return w, b

    w1, b1 = lin(k1, k2, state_dim, 128)
    w2, b2 = lin(k3, k4, 128, 64)
    w3, b3 = lin(k5, k6, 64, action_dim)
    return (w1, b1, w2, b2, w3, b3)


if __name__ == "__main__":
    state_dim = 16
    action_dim = 4
    batch = 8

    key = jax.random.PRNGKey(0)
    k_params, k_x = jax.random.split(key)

    params = init_params(state_dim, action_dim, k_params)
    prepared = prepare_params(params)          # pad/cast once, outside the hot path
    x = jax.random.normal(k_x, (batch, state_dim), dtype=jnp.float32)

    out = qnetwork_forward(x, prepared)
    out = jax.block_until_ready(out)

    # Pure-JAX f32 reference (highest precision so both sides are ~exact f32).
    w1, b1, w2, b2, w3, b3 = params
    hp = jax.lax.Precision.HIGHEST
    ref = jnp.maximum(jnp.dot(x, w1, precision=hp) + b1, 0.0)
    ref = jnp.maximum(jnp.dot(ref, w2, precision=hp) + b2, 0.0)
    ref = jnp.dot(ref, w3, precision=hp) + b3

    assert out.shape == (batch, action_dim)
    max_err = jnp.max(jnp.abs(out - ref))
    assert jnp.allclose(out, ref, atol=1e-2, rtol=1e-2), f"max abs err {max_err}"

    print("KERNEL_OK")
</pallas_src>

<mosaic_0001>
module attributes {stable_mosaic.version = 11 : i64} {
  func.func @qnet_kernel(%arg0: i32, %arg1: memref<8x16xf32, #tpu.memory_space<vmem>>, %arg2: memref<16x128xf32, #tpu.memory_space<vmem>>, %arg3: memref<1x128xf32, #tpu.memory_space<vmem>>, %arg4: memref<128x128xf32, #tpu.memory_space<vmem>>, %arg5: memref<1x128xf32, #tpu.memory_space<vmem>>, %arg6: memref<128x128xf32, #tpu.memory_space<vmem>>, %arg7: memref<1x4xf32, #tpu.memory_space<vmem>>, %arg8: memref<8x4xf32, #tpu.memory_space<vmem>>) attributes {dimension_semantics = [#tpu.dimension_semantics<parallel>], iteration_bounds = array<i64: 1>, scalar_prefetch = 0 : i64, scratch_operands = 0 : i64, tpu.core_type = #tpu.core_type<tc>, window_params = [{transform_indices = @transform_0, window_bounds = array<i64: 8, 16>}, {pipeline_mode = #tpu.pipeline_mode<synchronous>, transform_indices = @transform_1, window_bounds = array<i64: 16, 128>}, {pipeline_mode = #tpu.pipeline_mode<synchronous>, transform_indices = @transform_2, window_bounds = array<i64: 1, 128>}, {pipeline_mode = #tpu.pipeline_mode<synchronous>, transform_indices = @transform_3, window_bounds = array<i64: 128, 128>}, {pipeline_mode = #tpu.pipeline_mode<synchronous>, transform_indices = @transform_4, window_bounds = array<i64: 1, 128>}, {pipeline_mode = #tpu.pipeline_mode<synchronous>, transform_indices = @transform_5, window_bounds = array<i64: 128, 128>}, {pipeline_mode = #tpu.pipeline_mode<synchronous>, transform_indices = @transform_6, window_bounds = array<i64: 1, 4>}, {transform_indices = @transform_7, window_bounds = array<i64: 8, 4>}]} {
    %c0 = arith.constant 0 : index
    %c0_0 = arith.constant 0 : index
    %0 = vector.load %arg1[%c0, %c0_0] : memref<8x16xf32, #tpu.memory_space<vmem>>, vector<8x16xf32>
    %c0_1 = arith.constant 0 : index
    %c0_2 = arith.constant 0 : index
    %1 = vector.load %arg2[%c0_1, %c0_2] : memref<16x128xf32, #tpu.memory_space<vmem>>, vector<16x128xf32>
    %cst = arith.constant dense<0.000000e+00> : vector<8x128xf32>
    %2 = tpu.matmul %0, %1, %cst {dimension_numbers = #tpu.dot_dimension_numbers<[1], [0], [0], [1], [0, 0, 1, 1], [], []>} : vector<8x16xf32>, vector<16x128xf32>, vector<8x128xf32> -> vector<8x128xf32>
    %c0_3 = arith.constant 0 : index
    %c0_4 = arith.constant 0 : index
    %3 = vector.load %arg3[%c0_3, %c0_4] : memref<1x128xf32, #tpu.memory_space<vmem>>, vector<1x128xf32>
    %4 = vector.broadcast %3 : vector<1x128xf32> to vector<8x128xf32>
    %5 = arith.addf %2, %4 : vector<8x128xf32>
    %cst_5 = arith.constant 0.000000e+00 : f32
    %6 = vector.broadcast %cst_5 : f32 to vector<8x128xf32>
    %7 = arith.maximumf %5, %6 : vector<8x128xf32>
    %c0_6 = arith.constant 0 : index
    %c0_7 = arith.constant 0 : index
    %8 = vector.load %arg4[%c0_6, %c0_7] : memref<128x128xf32, #tpu.memory_space<vmem>>, vector<128x128xf32>
    %cst_8 = arith.constant dense<0.000000e+00> : vector<8x128xf32>
    %9 = tpu.matmul %7, %8, %cst_8 {dimension_numbers = #tpu.dot_dimension_numbers<[1], [0], [0], [1], [0, 0, 1, 1], [], []>} : vector<8x128xf32>, vector<128x128xf32>, vector<8x128xf32> -> vector<8x128xf32>
    %c0_9 = arith.constant 0 : index
    %c0_10 = arith.constant 0 : index
    %10 = vector.load %arg5[%c0_9, %c0_10] : memref<1x128xf32, #tpu.memory_space<vmem>>, vector<1x128xf32>
    %11 = vector.broadcast %10 : vector<1x128xf32> to vector<8x128xf32>
    %12 = arith.addf %9, %11 : vector<8x128xf32>
    %cst_11 = arith.constant 0.000000e+00 : f32
    %13 = vector.broadcast %cst_11 : f32 to vector<8x128xf32>
    %14 = arith.maximumf %12, %13 : vector<8x128xf32>
    %c0_12 = arith.constant 0 : index
    %c0_13 = arith.constant 0 : index
    %15 = vector.load %arg6[%c0_12, %c0_13] : memref<128x128xf32, #tpu.memory_space<vmem>>, vector<128x128xf32>
    %cst_14 = arith.constant dense<0.000000e+00> : vector<8x128xf32>
    %16 = tpu.matmul %14, %15, %cst_14 {dimension_numbers = #tpu.dot_dimension_numbers<[1], [0], [0], [1], [0, 0, 1, 1], [], []>} : vector<8x128xf32>, vector<128x128xf32>, vector<8x128xf32> -> vector<8x128xf32>
    %17 = vector.extract_strided_slice %16 {offsets = [0, 0], sizes = [8, 4], strides = [1, 1]} : vector<8x128xf32> to vector<8x4xf32>
    %c0_15 = arith.constant 0 : index
    %c0_16 = arith.constant 0 : index
    %18 = vector.load %arg7[%c0_15, %c0_16] : memref<1x4xf32, #tpu.memory_space<vmem>>, vector<1x4xf32>
    %19 = vector.broadcast %18 : vector<1x4xf32> to vector<8x4xf32>
    %20 = arith.addf %17, %19 : vector<8x4xf32>
    %c0_17 = arith.constant 0 : index
    %c0_18 = arith.constant 0 : index
    %21 = vector.load %arg8[%c0_17, %c0_18] : memref<8x4xf32, #tpu.memory_space<vmem>>, vector<8x4xf32>
    tpu.vector_store %arg8[%c0_17, %c0_18], %20 {strides = array<i32>} : memref<8x4xf32, #tpu.memory_space<vmem>>, vector<8x4xf32>,
    return
  }
  func.func @transform_0(%arg0: i32) -> (i32, i32) {
    %c0_i32 = arith.constant 0 : i32
    %c0_i32_0 = arith.constant 0 : i32
    return %arg0, %c0_i32 : i32, i32
  }
  func.func @transform_1(%arg0: i32) -> (i32, i32) {
    %c0_i32 = arith.constant 0 : i32
    %c0_i32_0 = arith.constant 0 : i32
    %c0_i32_1 = arith.constant 0 : i32
    return %c0_i32, %c0_i32_0 : i32, i32
  }
  func.func @transform_2(%arg0: i32) -> (i32, i32) {
    %c0_i32 = arith.constant 0 : i32
    %c0_i32_0 = arith.constant 0 : i32
    %c0_i32_1 = arith.constant 0 : i32
    return %c0_i32, %c0_i32_0 : i32, i32
  }
  func.func @transform_3(%arg0: i32) -> (i32, i32) {
    %c0_i32 = arith.constant 0 : i32
    %c0_i32_0 = arith.constant 0 : i32
    %c0_i32_1 = arith.constant 0 : i32
    return %c0_i32, %c0_i32_0 : i32, i32
  }
  func.func @transform_4(%arg0: i32) -> (i32, i32) {
    %c0_i32 = arith.constant 0 : i32
    %c0_i32_0 = arith.constant 0 : i32
    %c0_i32_1 = arith.constant 0 : i32
    return %c0_i32, %c0_i32_0 : i32, i32
  }
  func.func @transform_5(%arg0: i32) -> (i32, i32) {
    %c0_i32 = arith.constant 0 : i32
    %c0_i32_0 = arith.constant 0 : i32
    %c0_i32_1 = arith.constant 0 : i32
    return %c0_i32, %c0_i32_0 : i32, i32
  }
  func.func @transform_6(%arg0: i32) -> (i32, i32) {
    %c0_i32 = arith.constant 0 : i32
    %c0_i32_0 = arith.constant 0 : i32
    %c0_i32_1 = arith.constant 0 : i32
    return %c0_i32, %c0_i32_0 : i32, i32
  }
  func.func @transform_7(%arg0: i32) -> (i32, i32) {
    %c0_i32 = arith.constant 0 : i32
    %c0_i32_0 = arith.constant 0 : i32
    return %arg0, %c0_i32 : i32, i32
  }
}

</mosaic_0001>

<llo_original>
// kernel: tpu_custom_call.1
$region0: #{tpu_custom_call.1}
  #allocation0 [shape = 'u32[]', space=smem, size = 0x4, offset = 0x4, fixed_abs, tag = 'smem constant byte address 0x4 - core index']
  #allocation1 [shape = 'u32[72,128]{1,0:T(1,128)}', space=vmem, size = 0x9000, scoped, tag = 'internal scratch']
  %s0 = inlined_call_operand.hbm [shape: f32[8,16], index: 0, kind: input, shape index: {}]
  %s1 = inlined_call_operand.hbm [shape: f32[16,128], index: 1, kind: input, shape index: {}]
  %s2 = inlined_call_operand.vmem [shape: f32[1,128], index: 2, kind: input, shape index: {}]
  %s3 = inlined_call_operand.hbm [shape: f32[128,128], index: 3, kind: input, shape index: {}]
  %s4 = inlined_call_operand.vmem [shape: f32[1,128], index: 4, kind: input, shape index: {}]
  %s5 = inlined_call_operand.hbm [shape: f32[128,128], index: 5, kind: input, shape index: {}]
  %s6 = inlined_call_operand.vmem [shape: f32[1,4], index: 6, kind: input, shape index: {}]
  %s7 = inlined_call_operand.vmem [shape: f32[8,4], index: 7, kind: output, shape index: {}]
  %s8 = sld [smem:[#allocation0]]
  $region54: #{tpu_custom_call.1} parent=0
    _
  %s10 = ssub.s32 1, %s8
  %s11 = scalar_select 0, %s10, %s8
  $region1: #{tpu_custom_call.1} parent=0
    #allocation2 [shape = 'u8[4096]{0}', space=vmem, size = 0x1000, scoped, tag = 'input window, operand 0, single buffered']
    #allocation3 [shape = 's32[1]{0}', space=sflag, size = 0x4, scoped, tag = 'scoped memory for tpu_custom_call.1']
    #allocation4 [shape = 'u8[8192]{0}', space=vmem, size = 0x2000, scoped, tag = 'input window, operand 1, single buffered']
    #allocation5 [shape = 's32[1]{0}', space=sflag, size = 0x4, scoped, tag = 'scoped memory for tpu_custom_call.1']
    #allocation6 [shape = 'u8[65536]{0}', space=vmem, size = 0x10000, scoped, tag = 'input window, operand 3, single buffered']
    #allocation7 [shape = 'u8[65536]{0}', space=vmem, size = 0x10000, scoped, tag = 'input window, operand 5, single buffered']
    #allocation8 [shape = 's32[1]{0}', space=sflag, size = 0x4, scoped, tag = 'scoped memory for tpu_custom_call.1']
    %12 = vsyncpa [#allocation3], 0
    %13 = vsyncpa [#allocation5], 0
    %14 = vsyncpa [#allocation8], 0
    // Predicated region
    $region2: #{tpu_custom_call.1} parent=1 // pred_check
      _
    $region3: #{tpu_custom_call.1} parent=1 // pred_check_branch
      %16 = sbr.rel (0) target = $region5
    $region4: #{tpu_custom_call.1} parent=1 // pred_region
      %18 = vsyncadd [#allocation3], 0
      %s20 = sshll.u32 %s0, 4
      %s21 = int_to_ptr.hbm [resolvable:$true] %s20
      %s22 = sshll.u32 [#allocation2], 4
      %s23 = int_to_ptr.vmem [resolvable:$true] %s22
      %25 = dma.hbm_to_vmem [thread:$0]  %s21, 128, %s23, [#allocation3]
    $region5: #{tpu_custom_call.1} parent=1 // pred_fallthru
      _
    // Predicated region
    $region6: #{tpu_custom_call.1} parent=1 // pred_check
      _
    $region7: #{tpu_custom_call.1} parent=1 // pred_check_branch
      %27 = sbr.rel (0) target = $region9
    $region8: #{tpu_custom_call.1} parent=1 // pred_region
      %29 = vsyncadd [#allocation5], 0
      %s30 = sshll.u32 %s1, 4
      %s31 = int_to_ptr.hbm [resolvable:$true] %s30
      %s32 = sshll.u32 [#allocation4], 4
      %s33 = int_to_ptr.vmem [resolvable:$true] %s32
      %38 = dma.hbm_to_vmem [thread:$0]  %s31, 256, %s33, [#allocation5], 128, 128, 8
    $region9: #{tpu_custom_call.1} parent=1 // pred_fallthru
      _
    // Predicated region
    $region10: #{tpu_custom_call.1} parent=1 // pred_check
      _
    $region11: #{tpu_custom_call.1} parent=1 // pred_check_branch
      %40 = sbr.rel (0) target = $region13
    $region12: #{tpu_custom_call.1} parent=1 // pred_region
      _
    $region13: #{tpu_custom_call.1} parent=1 // pred_fallthru
      _
    // Predicated region
    $region14: #{tpu_custom_call.1} parent=1 // pred_check
      _
    $region15: #{tpu_custom_call.1} parent=1 // pred_check_branch
      %42 = sbr.rel (0) target = $region17
    $region16: #{tpu_custom_call.1} parent=1 // pred_region
      %44 = vsyncadd [#allocation5], 0
      %s45 = sshll.u32 %s3, 4
      %s46 = int_to_ptr.hbm [resolvable:$true] %s45
      %s47 = sshll.u32 [#allocation6], 4
      %s48 = int_to_ptr.vmem [resolvable:$true] %s47
      %53 = dma.hbm_to_vmem [thread:$0]  %s46, 2048, %s48, [#allocation5], 128, 128, 8
    $region17: #{tpu_custom_call.1} parent=1 // pred_fallthru
      _
    // Predicated region
    $region18: #{tpu_custom_call.1} parent=1 // pred_check
      _
    $region19: #{tpu_custom_call.1} parent=1 // pred_check_branch
      %55 = sbr.rel (0) target = $region21
    $region20: #{tpu_custom_call.1} parent=1 // pred_region
      _
    $region21: #{tpu_custom_call.1} parent=1 // pred_fallthru
      _
    // Predicated region
    $region22: #{tpu_custom_call.1} parent=1 // pred_check
      _
    $region23: #{tpu_custom_call.1} parent=1 // pred_check_branch
      %57 = sbr.rel (0) target = $region25
    $region24: #{tpu_custom_call.1} parent=1 // pred_region
      %59 = vsyncadd [#allocation8], 0
      %s60 = sshll.u32 %s5, 4
      %s61 = int_to_ptr.hbm [resolvable:$true] %s60
      %s62 = sshll.u32 [#allocation7], 4
      %s63 = int_to_ptr.vmem [resolvable:$true] %s62
      %68 = dma.hbm_to_vmem [thread:$0]  %s61, 2048, %s63, [#allocation8], 128, 128, 8
    $region25: #{tpu_custom_call.1} parent=1 // pred_fallthru
      _
    // Predicated region
    $region26: #{tpu_custom_call.1} parent=1 // pred_check
      _
    $region27: #{tpu_custom_call.1} parent=1 // pred_check_branch
      %70 = sbr.rel (0) target = $region29
    $region28: #{tpu_custom_call.1} parent=1 // pred_region
      _
    $region29: #{tpu_custom_call.1} parent=1 // pred_fallthru
      _
    // Predicated region
    $region30: #{tpu_custom_call.1} parent=1 // pred_check
      _
    $region31: #{tpu_custom_call.1} parent=1 // pred_check_branch
      %72 = sbr.rel (0) target = $region33
    $region32: #{tpu_custom_call.1} parent=1 // pred_region
      %74 = dma.done [#allocation3], 128
    $region33: #{tpu_custom_call.1} parent=1 // pred_fallthru
      _
    // Predicated region
    $region34: #{tpu_custom_call.1} parent=1 // pred_check
      _
    $region35: #{tpu_custom_call.1} parent=1 // pred_check_branch
      %76 = sbr.rel (0) target = $region37
    $region36: #{tpu_custom_call.1} parent=1 // pred_region
      %78 = dma.done [#allocation5], 256
    $region37: #{tpu_custom_call.1} parent=1 // pred_fallthru
      _
    // Predicated region
    $region38: #{tpu_custom_call.1} parent=1 // pred_check
      _
    $region39: #{tpu_custom_call.1} parent=1 // pred_check_branch
      %80 = sbr.rel (0) target = $region41
    $region40: #{tpu_custom_call.1} parent=1 // pred_region
      %82 = dma.done [#allocation5], 2048
    $region41: #{tpu_custom_call.1} parent=1 // pred_fallthru
      _
    // Predicated region
    $region42: #{tpu_custom_call.1} parent=1 // pred_check
      _
    $region43: #{tpu_custom_call.1} parent=1 // pred_check_branch
      %84 = sbr.rel (0) target = $region45
    $region44: #{tpu_custom_call.1} parent=1 // pred_region
      %86 = dma.done [#allocation8], 2048
    $region45: #{tpu_custom_call.1} parent=1 // pred_fallthru
      _
    %v87 = vld [vmem:[#allocation2] sm:$0xff]
    %v88 = vld [vmem:[#allocation4] sm:$0xff]
    %v89 = vld [vmem:[#allocation4 + $0x8] sm:$0xff]
    %v90 = vld [vmem:[%s2] sm:$0x1]
    %v92 = vperm.slane %v90, 0
    %vm94 = vcmask 130048
    %v96 = vsel %vm94, %v87, 0
    %98 = vmatpush.msra.mxu0 0.0
    %99 = vmatpush.msra.mxu0 0.0
    %100 = vmatpush.msra.mxu0 0.0
    %101 = vmatpush.msra.mxu0 0.0
    %102 = vmatpush.msra.mxu0 0.0
    %103 = vmatpush.msra.mxu0 0.0
    %104 = vmatpush.msra.mxu0 0.0
    %105 = vmatpush.msra.mxu0 0.0
    %106 = vmatpush.msra.mxu0 0.0
    %107 = vmatpush.msra.mxu0 0.0
    %108 = vmatpush.msra.mxu0 0.0
    %109 = vmatpush.msra.mxu0 0.0
    %110 = vmatpush.msra.mxu0 0.0
    %111 = vmatpush.msra.mxu0 0.0
    %112 = vmatpush.msra.mxu0 %v89
    %113 = vmatpush.msra.mxu0 %v88
    %114 = vmatmul.f32.gmra.mxu0 %v96
    %v115 = vpop.f32.mrf.mxu0
    %v116 = vadd.f32 %v92, %v115
    %117 = vdwg.mxu0
    %v118 = vmax.f32 %v116, 0.0
    %v119 = vld [vmem:[#allocation6] sm:$0xff]
    %v120 = vld [vmem:[#allocation6 + $0x8] sm:$0xff]
    %v121 = vld [vmem:[#allocation6 + $0x10] sm:$0xff]
    %v122 = vld [vmem:[#allocation6 + $0x18] sm:$0xff]
    %v123 = vld [vmem:[#allocation6 + $0x20] sm:$0xff]
    %v124 = vld [vmem:[#allocation6 + $0x28] sm:$0xff]
    %v125 = vld [vmem:[#allocation6 + $0x30] sm:$0xff]
    %v126 = vld [vmem:[#allocation6 + $0x38] sm:$0xff]
    %v127 = vld [vmem:[#allocation6 + $0x40] sm:$0xff]
    %v128 = vld [vmem:[#allocation6 + $0x48] sm:$0xff]
    %v129 = vld [vmem:[#allocation6 + $0x50] sm:$0xff]
    %v130 = vld [vmem:[#allocation6 + $0x58] sm:$0xff]
    %v131 = vld [vmem:[#allocation6 + $0x60] sm:$0xff]
    %v132 = vld [vmem:[#allocation6 + $0x68] sm:$0xff]
    %v133 = vld [vmem:[#allocation6 + $0x70] sm:$0xff]
    %v134 = vld [vmem:[#allocation6 + $0x78] sm:$0xff]
    %v135 = vld [vmem:[%s4] sm:$0x1]
    %v137 = vperm.slane %v135, 0
    %139 = vmatpush.msra.mxu0 %v134
    %140 = vmatpush.msra.mxu0 %v133
    %141 = vmatpush.msra.mxu0 %v132
    %142 = vmatpush.msra.mxu0 %v131
    %143 = vmatpush.msra.mxu0 %v130
    %144 = vmatpush.msra.mxu0 %v129
    %145 = vmatpush.msra.mxu0 %v128
    %146 = vmatpush.msra.mxu0 %v127
    %147 = vmatpush.msra.mxu0 %v126
    %148 = vmatpush.msra.mxu0 %v125
    %149 = vmatpush.msra.mxu0 %v124
    %150 = vmatpush.msra.mxu0 %v123
    %151 = vmatpush.msra.mxu0 %v122
    %152 = vmatpush.msra.mxu0 %v121
    %153 = vmatpush.msra.mxu0 %v120
    %154 = vmatpush.msra.mxu0 %v119
    %155 = vmatmul.f32.gmra.mxu0 %v118
    %v156 = vpop.f32.mrf.mxu0
    %v157 = vadd.f32 %v137, %v156
    %158 = vdwg.mxu0
    %v159 = vmax.f32 %v157, 0.0
    %v160 = vld [vmem:[#allocation7] sm:$0xff]
    %v161 = vld [vmem:[#allocation7 + $0x8] sm:$0xff]
    %v162 = vld [vmem:[#allocation7 + $0x10] sm:$0xff]
    %v163 = vld [vmem:[#allocation7 + $0x18] sm:$0xff]
    %v164 = vld [vmem:[#allocation7 + $0x20] sm:$0xff]
    %v165 = vld [vmem:[#allocation7 + $0x28] sm:$0xff]
    %v166 = vld [vmem:[#allocation7 + $0x30] sm:$0xff]
    %v167 = vld [vmem:[#allocation7 + $0x38] sm:$0xff]
    %v168 = vld [vmem:[#allocation7 + $0x40] sm:$0xff]
    %v169 = vld [vmem:[#allocation7 + $0x48] sm:$0xff]
    %v170 = vld [vmem:[#allocation7 + $0x50] sm:$0xff]
    %v171 = vld [vmem:[#allocation7 + $0x58] sm:$0xff]
    %v172 = vld [vmem:[#allocation7 + $0x60] sm:$0xff]
    %v173 = vld [vmem:[#allocation7 + $0x68] sm:$0xff]
    %v174 = vld [vmem:[#allocation7 + $0x70] sm:$0xff]
    %v175 = vld [vmem:[#allocation7 + $0x78] sm:$0xff]
    %176 = vmatpush.msra.mxu0 %v175
    %177 = vmatpush.msra.mxu0 %v174
    %178 = vmatpush.msra.mxu0 %v173
    %179 = vmatpush.msra.mxu0 %v172
    %180 = vmatpush.msra.mxu0 %v171
    %181 = vmatpush.msra.mxu0 %v170
    %182 = vmatpush.msra.mxu0 %v169
    %183 = vmatpush.msra.mxu0 %v168
    %184 = vmatpush.msra.mxu0 %v167
    %185 = vmatpush.msra.mxu0 %v166
    %186 = vmatpush.msra.mxu0 %v165
    %187 = vmatpush.msra.mxu0 %v164
    %188 = vmatpush.msra.mxu0 %v163
    %189 = vmatpush.msra.mxu0 %v162
    %190 = vmatpush.msra.mxu0 %v161
    %191 = vmatpush.msra.mxu0 %v160
    %192 = vmatmul.f32.gmra.mxu0 %v159
    %v193 = vpop.f32.mrf.mxu0
    %v194 = vadd.f32 0.0, %v193
    %195 = vdwg.mxu0
    %v196 = vld [vmem:[%s6] sm:$0x1]
    %v198 = vperm.slane %v196, 0
    %v200 = vadd.f32 %v194, %v198
    %vm201 = vcmask 31744
    %202 = vst.msk [vmem:[%s7] sm:$0xff] %vm201, %v200
    // Predicated region
    $region46: #{tpu_custom_call.1} parent=1 // pred_check
      _
    $region47: #{tpu_custom_call.1} parent=1 // pred_check_branch
      %204 = sbr.rel (0) target = $region49
    $region48: #{tpu_custom_call.1} parent=1 // pred_region
      _
    $region49: #{tpu_custom_call.1} parent=1 // pred_fallthru
      _
    // Predicated region
    $region50: #{tpu_custom_call.1} parent=1 // pred_check
      _
    $region51: #{tpu_custom_call.1} parent=1 // pred_check_branch
      %206 = sbr.rel (0) target = $region53
    $region52: #{tpu_custom_call.1} parent=1 // pred_region
      _
    $region53: #{tpu_custom_call.1} parent=1 // pred_fallthru
      _
    %207 = vsyncpa [#allocation3], 1
    %208 = vsyncpa [#allocation5], 1
    %209 = vsyncpa [#allocation8], 1

</llo_original>
